<compile_context>
chip_gen: v7x
topology: tpu7x:2x2x1
jax: 0.10.0
libtpu: 0.0.40
codegen_flags: <defaults>
</compile_context>

<pallas_src>
import jax
import jax.numpy as jnp
import numpy as np
from jax.experimental import pallas as pl
from jax.experimental.pallas import tpu as pltpu


def ncf_mlp_kernel(p_ref, t_ref, w1p_ref, w1t_ref, b1_ref,
                   w2_ref, b2_ref, w3_ref, b3_ref, o_ref):
    # p_ref, t_ref : (TB, F)   bf16 activations (batch on sublanes, features on lanes)
    # w1p, w1t     : (F, 128)  bf16     b1: (1, 128) f32
    # w2           : (128, 64) bf16     b2: (1, 64)  f32
    # w3           : (1, 64)   f32 (pre-transposed row)   b3: (1, 1) f32
    # fc1: split-K form of concat([p, t]) @ W1 (avoids materializing the concat).
    h1 = jnp.dot(p_ref[...], w1p_ref[...], preferred_element_type=jnp.float32)
    h1 = h1 + jnp.dot(t_ref[...], w1t_ref[...], preferred_element_type=jnp.float32)
    h1 = jnp.maximum(h1 + b1_ref[...], 0.0)                       # relu (f32, VPU)
    # fc2 on the MXU: bf16 operands, fp32 accumulation.
    h2 = jnp.dot(h1.astype(jnp.bfloat16), w2_ref[...],
                 preferred_element_type=jnp.float32)
    h2 = jnp.maximum(h2 + b2_ref[...], 0.0)                       # relu (f32, VPU)
    # fc3 (K=64, N=1): VPU multiply + cross-lane reduce instead of a wasteful N=1 MXU pass.
    logits = jnp.sum(h2 * w3_ref[...], axis=-1, keepdims=True) + b3_ref[...]
    o_ref[...] = jax.nn.sigmoid(logits)                           # EUP, f32


def _round_up(x, m):
    return ((x + m - 1) // m) * m


def ncf_mlp_pallas(p_emb, t_emb, w1p, w1t, b1, w2, b2, w3_row, b3, *, tb=None):
    B, F = p_emb.shape
    H1 = w1p.shape[1]
    H2 = w2.shape[1]

    if tb is None:
        # Large enough to amortize per-grid-step overhead (~0.35 us/step), small enough
        # to leave plenty of VMEM headroom on every TPU generation (incl. v7x's 64 MiB).
        tb = min(1024, _round_up(B, 16))
    assert tb % 16 == 0, "batch tile must be a multiple of 16 (bf16 sublane packing)"

    Bp = _round_up(B, tb)
    if Bp != B:
        pad = ((0, Bp - B), (0, 0))
        p_emb = jnp.pad(p_emb, pad)   # padded rows compute garbage and are sliced off
        t_emb = jnp.pad(t_emb, pad)
    num_tiles = Bp // tb

    const2d = lambda arr: pl.BlockSpec(arr.shape, lambda i: (0, 0))

    grid_spec = pltpu.PrefetchScalarGridSpec(
        num_scalar_prefetch=0,
        grid=(num_tiles,),
        in_specs=[
            pl.BlockSpec((tb, F), lambda i: (i, 0)),   # p_emb tile (streamed, pipelined)
            pl.BlockSpec((tb, F), lambda i: (i, 0)),   # t_emb tile (streamed, pipelined)
            const2d(w1p), const2d(w1t), const2d(b1),   # weights/biases: VMEM-resident
            const2d(w2), const2d(b2),
            const2d(w3_row), const2d(b3),
        ],
        out_specs=pl.BlockSpec((tb, 1), lambda i: (i, 0)),
    )

    # Advisory cost estimate for XLA's scheduler.
    flops = 2 * Bp * (2 * F * H1 + H1 * H2 + H2)
    bytes_accessed = (
        2 * Bp * F * p_emb.dtype.itemsize            # streamed activations (bf16)
        + Bp * 4                                     # f32 output
        + (w1p.size + w1t.size + w2.size) * 2        # bf16 weights
        + (b1.size + b2.size + w3_row.size + b3.size) * 4
    )

    out = pl.pallas_call(
        ncf_mlp_kernel,
        out_shape=jax.ShapeDtypeStruct((Bp, 1), jnp.float32),
        grid_spec=grid_spec,
        compiler_params=pltpu.CompilerParams(
            dimension_semantics=("parallel",),       # shard batch tiles across TCs (v7x)
        ),
        cost_estimate=pl.CostEstimate(
            flops=flops, transcendentals=Bp, bytes_accessed=bytes_accessed),
    )(p_emb, t_emb, w1p, w1t, b1, w2, b2, w3_row, b3)

    return out[:B] if Bp != B else out


def init_params(key, n_playlists, n_tracks, n_factors):
    ks = jax.random.split(key, 8)

    def linear(kw, kb, fan_in, fan_out):
        bound = 1.0 / np.sqrt(fan_in)
        w = jax.random.uniform(kw, (fan_in, fan_out), jnp.float32, -bound, bound)
        b = jax.random.uniform(kb, (1, fan_out), jnp.float32, -bound, bound)
        return w, b

    params = {}
    # nn.Embedding default init ~ N(0, 1)
    params["playlist_emb"] = jax.random.normal(ks[0], (n_playlists, n_factors), jnp.float32)
    params["track_emb"] = jax.random.normal(ks[1], (n_tracks, n_factors), jnp.float32)
    params["w1"], params["b1"] = linear(ks[2], ks[3], n_factors * 2, 128)
    params["w2"], params["b2"] = linear(ks[4], ks[5], 128, 64)
    params["w3"], params["b3"] = linear(ks[6], ks[7], 64, 1)
    return params


def neural_cf_forward(params, playlist_id, track_id, *, tb=None):
    # Embedding gather (data-dependent rows from potentially huge tables) stays in XLA.
    # Cast gathered activations to bf16: halves the kernel's dominant HBM read and feeds
    # the MXU its native operand type (fp32 accumulation inside the kernel).
    p_emb = jnp.take(params["playlist_emb"], playlist_id, axis=0).astype(jnp.bfloat16)
    t_emb = jnp.take(params["track_emb"], track_id, axis=0).astype(jnp.bfloat16)
    F = p_emb.shape[1]
    w1 = params["w1"]
    w1p = w1[:F, :].astype(jnp.bfloat16)     # concat([p, t]) @ w1 == p @ w1[:F] + t @ w1[F:]
    w1t = w1[F:, :].astype(jnp.bfloat16)
    w2 = params["w2"].astype(jnp.bfloat16)
    w3_row = params["w3"].T                  # (1, 64) f32 row for the in-kernel VPU reduce
    return ncf_mlp_pallas(p_emb, t_emb, w1p, w1t, params["b1"],
                          w2, params["b2"], w3_row, params["b3"], tb=tb)


def neural_cf_reference(params, playlist_id, track_id):
    # Mirrors the kernel's bf16-operand / fp32-accumulate numerics for a tight comparison.
    f32, bf16 = jnp.float32, jnp.bfloat16
    p_emb = jnp.take(params["playlist_emb"], playlist_id, axis=0).astype(bf16).astype(f32)
    t_emb = jnp.take(params["track_emb"], track_id, axis=0).astype(bf16).astype(f32)
    x = jnp.concatenate([p_emb, t_emb], axis=-1)
    w1 = params["w1"].astype(bf16).astype(f32)
    w2 = params["w2"].astype(bf16).astype(f32)
    h1 = jnp.maximum(x @ w1 + params["b1"], 0.0)
    h1 = h1.astype(bf16).astype(f32)
    h2 = jnp.maximum(h1 @ w2 + params["b2"], 0.0)
    logits = jnp.sum(h2 * params["w3"][:, 0], axis=-1, keepdims=True) + params["b3"]
    return jax.nn.sigmoid(logits)


if __name__ == "__main__":
    key = jax.random.PRNGKey(0)
    n_playlists, n_tracks, n_factors, batch = 32, 64, 16, 24

    pkey, ids_key1, ids_key2 = jax.random.split(key, 3)
    params = init_params(pkey, n_playlists, n_tracks, n_factors)

    playlist_id = jax.random.randint(ids_key1, (batch,), 0, n_playlists, dtype=jnp.int32)
    track_id = jax.random.randint(ids_key2, (batch,), 0, n_tracks, dtype=jnp.int32)

    # Small batch tile so the test exercises the multi-tile grid + padded-tail path.
    out = neural_cf_forward(params, playlist_id, track_id, tb=16)
    out = jax.block_until_ready(out)
    assert out.shape == (batch, 1) and out.dtype == jnp.float32

    ref = jax.block_until_ready(neural_cf_reference(params, playlist_id, track_id))
    np.testing.assert_allclose(np.asarray(out), np.asarray(ref), rtol=1e-4, atol=1e-4)

    print("KERNEL_OK")
</pallas_src>

<mosaic_0001>
module attributes {stable_mosaic.version = 11 : i64} {
  func.func @ncf_mlp_kernel(%arg0: i32, %arg1: memref<16x16xbf16, #tpu.memory_space<vmem>>, %arg2: memref<16x16xbf16, #tpu.memory_space<vmem>>, %arg3: memref<16x128xbf16, #tpu.memory_space<vmem>>, %arg4: memref<16x128xbf16, #tpu.memory_space<vmem>>, %arg5: memref<1x128xf32, #tpu.memory_space<vmem>>, %arg6: memref<128x64xbf16, #tpu.memory_space<vmem>>, %arg7: memref<1x64xf32, #tpu.memory_space<vmem>>, %arg8: memref<1x64xf32, #tpu.memory_space<vmem>>, %arg9: memref<1x1xf32, #tpu.memory_space<vmem>>, %arg10: memref<16x1xf32, #tpu.memory_space<vmem>>) attributes {dimension_semantics = [#tpu.dimension_semantics<parallel>], iteration_bounds = array<i64: 2>, scalar_prefetch = 0 : i64, scratch_operands = 0 : i64, tpu.core_type = #tpu.core_type<tc>, window_params = [{transform_indices = @transform_0, window_bounds = array<i64: 16, 16>}, {transform_indices = @transform_1, window_bounds = array<i64: 16, 16>}, {pipeline_mode = #tpu.pipeline_mode<synchronous>, transform_indices = @transform_2, window_bounds = array<i64: 16, 128>}, {pipeline_mode = #tpu.pipeline_mode<synchronous>, transform_indices = @transform_3, window_bounds = array<i64: 16, 128>}, {pipeline_mode = #tpu.pipeline_mode<synchronous>, transform_indices = @transform_4, window_bounds = array<i64: 1, 128>}, {pipeline_mode = #tpu.pipeline_mode<synchronous>, transform_indices = @transform_5, window_bounds = array<i64: 128, 64>}, {pipeline_mode = #tpu.pipeline_mode<synchronous>, transform_indices = @transform_6, window_bounds = array<i64: 1, 64>}, {pipeline_mode = #tpu.pipeline_mode<synchronous>, transform_indices = @transform_7, window_bounds = array<i64: 1, 64>}, {pipeline_mode = #tpu.pipeline_mode<synchronous>, transform_indices = @transform_8, window_bounds = array<i64: 1, 1>}, {transform_indices = @transform_9, window_bounds = array<i64: 16, 1>}]} {
    %c0 = arith.constant 0 : index
    %c0_0 = arith.constant 0 : index
    %0 = vector.load %arg1[%c0, %c0_0] : memref<16x16xbf16, #tpu.memory_space<vmem>>, vector<16x16xbf16>
    %c0_1 = arith.constant 0 : index
    %c0_2 = arith.constant 0 : index
    %1 = vector.load %arg3[%c0_1, %c0_2] : memref<16x128xbf16, #tpu.memory_space<vmem>>, vector<16x128xbf16>
    %cst = arith.constant dense<0.000000e+00> : vector<16x128xf32>
    %2 = tpu.matmul %0, %1, %cst {dimension_numbers = #tpu.dot_dimension_numbers<[1], [0], [0], [1], [0, 0, 1, 1], [], []>} : vector<16x16xbf16>, vector<16x128xbf16>, vector<16x128xf32> -> vector<16x128xf32>
    %c0_3 = arith.constant 0 : index
    %c0_4 = arith.constant 0 : index
    %3 = vector.load %arg2[%c0_3, %c0_4] : memref<16x16xbf16, #tpu.memory_space<vmem>>, vector<16x16xbf16>
    %c0_5 = arith.constant 0 : index
    %c0_6 = arith.constant 0 : index
    %4 = vector.load %arg4[%c0_5, %c0_6] : memref<16x128xbf16, #tpu.memory_space<vmem>>, vector<16x128xbf16>
    %cst_7 = arith.constant dense<0.000000e+00> : vector<16x128xf32>
    %5 = tpu.matmul %3, %4, %cst_7 {dimension_numbers = #tpu.dot_dimension_numbers<[1], [0], [0], [1], [0, 0, 1, 1], [], []>} : vector<16x16xbf16>, vector<16x128xbf16>, vector<16x128xf32> -> vector<16x128xf32>
    %6 = arith.addf %2, %5 : vector<16x128xf32>
    %c0_8 = arith.constant 0 : index
    %c0_9 = arith.constant 0 : index
    %7 = vector.load %arg5[%c0_8, %c0_9] : memref<1x128xf32, #tpu.memory_space<vmem>>, vector<1x128xf32>
    %8 = vector.broadcast %7 : vector<1x128xf32> to vector<16x128xf32>
    %9 = arith.addf %6, %8 : vector<16x128xf32>
    %cst_10 = arith.constant 0.000000e+00 : f32
    %10 = vector.broadcast %cst_10 : f32 to vector<16x128xf32>
    %11 = arith.maximumf %9, %10 : vector<16x128xf32>
    %12 = arith.truncf %11 : vector<16x128xf32> to vector<16x128xbf16>
    %c0_11 = arith.constant 0 : index
    %c0_12 = arith.constant 0 : index
    %13 = vector.load %arg6[%c0_11, %c0_12] : memref<128x64xbf16, #tpu.memory_space<vmem>>, vector<128x64xbf16>
    %cst_13 = arith.constant dense<0.000000e+00> : vector<16x64xf32>
    %14 = tpu.matmul %12, %13, %cst_13 {dimension_numbers = #tpu.dot_dimension_numbers<[1], [0], [0], [1], [0, 0, 1, 1], [], []>} : vector<16x128xbf16>, vector<128x64xbf16>, vector<16x64xf32> -> vector<16x64xf32>
    %c0_14 = arith.constant 0 : index
    %c0_15 = arith.constant 0 : index
    %15 = vector.load %arg7[%c0_14, %c0_15] : memref<1x64xf32, #tpu.memory_space<vmem>>, vector<1x64xf32>
    %16 = vector.broadcast %15 : vector<1x64xf32> to vector<16x64xf32>
    %17 = arith.addf %14, %16 : vector<16x64xf32>
    %cst_16 = arith.constant 0.000000e+00 : f32
    %18 = vector.broadcast %cst_16 : f32 to vector<16x64xf32>
    %19 = arith.maximumf %17, %18 : vector<16x64xf32>
    %c0_17 = arith.constant 0 : index
    %c0_18 = arith.constant 0 : index
    %20 = vector.load %arg8[%c0_17, %c0_18] : memref<1x64xf32, #tpu.memory_space<vmem>>, vector<1x64xf32>
    %21 = vector.broadcast %20 : vector<1x64xf32> to vector<16x64xf32>
    %22 = arith.mulf %19, %21 : vector<16x64xf32>
    %cst_19 = arith.constant dense<0.000000e+00> : vector<16xf32>
    %23 = vector.multi_reduction <add>, %22, %cst_19 [1] : vector<16x64xf32> to vector<16xf32>
    %24 = vector.shape_cast %23 : vector<16xf32> to vector<16x1xf32>
    %c0_20 = arith.constant 0 : index
    %c0_21 = arith.constant 0 : index
    %25 = vector.load %arg9[%c0_20, %c0_21] : memref<1x1xf32, #tpu.memory_space<vmem>>, vector<1x1xf32>
    %26 = vector.broadcast %25 : vector<1x1xf32> to vector<16x1xf32>
    %27 = arith.addf %24, %26 : vector<16x1xf32>
    %28 = arith.negf %27 : vector<16x1xf32>
    %29 = math.exp %28 : vector<16x1xf32>
    %cst_22 = arith.constant 1.000000e+00 : f32
    %30 = vector.broadcast %cst_22 : f32 to vector<16x1xf32>
    %31 = arith.addf %30, %29 : vector<16x1xf32>
    %32 = arith.divf %30, %31 : vector<16x1xf32>
    %c0_23 = arith.constant 0 : index
    %c0_24 = arith.constant 0 : index
    %33 = vector.load %arg10[%c0_23, %c0_24] : memref<16x1xf32, #tpu.memory_space<vmem>>, vector<16x1xf32>
    tpu.vector_store %arg10[%c0_23, %c0_24], %32 {strides = array<i32>} : memref<16x1xf32, #tpu.memory_space<vmem>>, vector<16x1xf32>,
    return
  }
  func.func @transform_0(%arg0: i32) -> (i32, i32) {
    %c0_i32 = arith.constant 0 : i32
    %c0_i32_0 = arith.constant 0 : i32
    return %arg0, %c0_i32 : i32, i32
  }
  func.func @transform_1(%arg0: i32) -> (i32, i32) {
    %c0_i32 = arith.constant 0 : i32
    %c0_i32_0 = arith.constant 0 : i32
    return %arg0, %c0_i32 : i32, i32
  }
  func.func @transform_2(%arg0: i32) -> (i32, i32) {
    %c0_i32 = arith.constant 0 : i32
    %c0_i32_0 = arith.constant 0 : i32
    %c0_i32_1 = arith.constant 0 : i32
    return %c0_i32, %c0_i32_0 : i32, i32
  }
  func.func @transform_3(%arg0: i32) -> (i32, i32) {
    %c0_i32 = arith.constant 0 : i32
    %c0_i32_0 = arith.constant 0 : i32
    %c0_i32_1 = arith.constant 0 : i32
    return %c0_i32, %c0_i32_0 : i32, i32
  }
  func.func @transform_4(%arg0: i32) -> (i32, i32) {
    %c0_i32 = arith.constant 0 : i32
    %c0_i32_0 = arith.constant 0 : i32
    %c0_i32_1 = arith.constant 0 : i32
    return %c0_i32, %c0_i32_0 : i32, i32
  }
  func.func @transform_5(%arg0: i32) -> (i32, i32) {
    %c0_i32 = arith.constant 0 : i32
    %c0_i32_0 = arith.constant 0 : i32
    %c0_i32_1 = arith.constant 0 : i32
    return %c0_i32, %c0_i32_0 : i32, i32
  }
  func.func @transform_6(%arg0: i32) -> (i32, i32) {
    %c0_i32 = arith.constant 0 : i32
    %c0_i32_0 = arith.constant 0 : i32
    %c0_i32_1 = arith.constant 0 : i32
    return %c0_i32, %c0_i32_0 : i32, i32
  }
  func.func @transform_7(%arg0: i32) -> (i32, i32) {
    %c0_i32 = arith.constant 0 : i32
    %c0_i32_0 = arith.constant 0 : i32
    %c0_i32_1 = arith.constant 0 : i32
    return %c0_i32, %c0_i32_0 : i32, i32
  }
  func.func @transform_8(%arg0: i32) -> (i32, i32) {
    %c0_i32 = arith.constant 0 : i32
    %c0_i32_0 = arith.constant 0 : i32
    %c0_i32_1 = arith.constant 0 : i32
    return %c0_i32, %c0_i32_0 : i32, i32
  }
  func.func @transform_9(%arg0: i32) -> (i32, i32) {
    %c0_i32 = arith.constant 0 : i32
    %c0_i32_0 = arith.constant 0 : i32
    return %arg0, %c0_i32 : i32, i32
  }
}

</mosaic_0001>

<llo_original>
// kernel: tpu_custom_call.1
$region0: #{tpu_custom_call.1}
  #allocation0 [shape = 'u32[]', space=smem, size = 0x4, offset = 0x4, fixed_abs, tag = 'smem constant byte address 0x4 - core index']
  #allocation1 [shape = 'u32[144,128]{1,0:T(1,128)}', space=vmem, size = 0x12000, scoped, tag = 'internal scratch']
  #allocation2 [shape = 'f32[1,1]{1,0:T(1,128)S(1)}', space=vmem, size = 0x200, scoped, tag = 'scoped memory for tpu_custom_call.1']
  %s0 = inlined_call_operand.vmem [shape: bf16[32,16], index: 0, kind: input, shape index: {}]
  %s1 = inlined_call_operand.vmem [shape: bf16[32,16], index: 1, kind: input, shape index: {}]
  %s2 = inlined_call_operand.vmem [shape: bf16[16,128], index: 2, kind: input, shape index: {}]
  %s3 = inlined_call_operand.vmem [shape: bf16[16,128], index: 3, kind: input, shape index: {}]
  %s4 = inlined_call_operand.vmem [shape: f32[1,128], index: 4, kind: input, shape index: {}]
  %s5 = inlined_call_operand.vmem [shape: bf16[128,64], index: 5, kind: input, shape index: {}]
  %s6 = inlined_call_operand.vmem [shape: f32[1,64], index: 6, kind: input, shape index: {}]
  %s7 = inlined_call_operand.vmem [shape: f32[1,64], index: 7, kind: input, shape index: {}]
  %s8 = inlined_call_operand.<no memory space> [shape: f32[1,1], index: 8, kind: input, shape index: {}]
  %s9 = inlined_call_operand.vmem [shape: f32[32,1], index: 9, kind: output, shape index: {}]
  %s10 = sld [smem:[#allocation0]]
  $region69: #{tpu_custom_call.1} parent=0
    _
  %s12 = ssub.s32 1, %s10
  %s13 = scalar_select 0, %s12, %s10
  %v14 = vstv %s8
  %15 = vst [vmem:[#allocation2] sm:$0x1] %v14
  loop: start=0, step=1, limit=4
  $region2: #{tpu_custom_call.1} parent=0 // loop_pre_header
    _
  $region3: #{tpu_custom_call.1} parent=0 // loop_header
    %s17 = sphi 0, %s21
    %p18 = scmp.ge.s32.totalorder %s17, 4
    %s27 = sphi 0, %s29
    %s30 = sphi 0, %s27
    %s31 = sphi 0, %s30
    %s47 = sphi 0, %s31
    %s53 = sphi 0, %s55
    %s56 = sphi 0, %s53
    %s57 = sphi 0, %s56
    %s73 = sphi 0, %s57
    %s77 = sphi 0, %s77
    %s79 = sphi 0, %s77
    %s80 = sphi 0, %s79
    %s94 = sphi 0, %s80
    %s98 = sphi 0, %s98
    %s100 = sphi 0, %s98
    %s101 = sphi 0, %s100
    %s115 = sphi 0, %s101
    %s119 = sphi 0, %s119
    %s121 = sphi 0, %s119
    %s122 = sphi 0, %s121
    %s136 = sphi 0, %s122
    %s140 = sphi 0, %s140
    %s142 = sphi 0, %s140
    %s143 = sphi 0, %s142
    %s157 = sphi 0, %s143
    %s161 = sphi 0, %s161
    %s163 = sphi 0, %s161
    %s164 = sphi 0, %s163
    %s178 = sphi 0, %s164
    %s182 = sphi 0, %s182
    %s184 = sphi 0, %s182
    %s185 = sphi 0, %s184
    %s199 = sphi 0, %s185
    %s203 = sphi 0, %s203
    %s205 = sphi 0, %s203
    %s206 = sphi 0, %s205
    %s220 = sphi 0, %s206
    %s226 = sphi 0, %s228
    %s229 = sphi 0, %s226
    %s230 = sphi 0, %s229
    %s246 = sphi 0, %s230
  $region4: #{tpu_custom_call.1} parent=0 // loop_header_branch
    %20 = sbr.rel (%p18) target = $region8
  $region5: #{tpu_custom_call.1} parent=0 // loop_body
    %s22 = ssub.s32 %s17, 1
    %s23 = ssub.s32 %s17, 2
    %s24 = sadd.s32 %s17, 1
    %s25 = ssub.s32 %s17, %s24
    %p26 = scmp.eq.s32.totalorder %s25, 0
    %s28 = sadd.s32 %s27, 1
    %s29 = scalar_select %p26, %s27, %s28
    %p32 = pneg %p26
    %p33 = scmp.eq.s32.totalorder %s17, 1
    %p34 = por %p32, %p33
    %p35 = scmp.ne.s32.totalorder %s27, %s30
    %p36 = scmp.eq.s32.totalorder %s17, 0
    %p37 = por %p35, %p36
    %p38 = scmp.ne.s32.totalorder %s27, %s30
    %p39 = scmp.eq.s32.totalorder %s22, 1
    %p40 = por %p38, %p39
    %p41 = scmp.ne.s32.totalorder %s30, %s31
    %p42 = scmp.eq.s32.totalorder %s22, 0
    %p43 = por %p41, %p42
    %p44 = scmp.ne.s32.totalorder %s30, %s31
    %p45 = scmp.eq.s32.totalorder %s23, 1
    %p46 = por %p44, %p45
    %p48 = scmp.ne.s32.totalorder %s31, %s47
    %p49 = scmp.eq.s32.totalorder %s23, 0
    %p50 = por %p48, %p49
    %s51 = ssub.s32 %s17, %s24
    %p52 = scmp.eq.s32.totalorder %s51, 0
    %s54 = sadd.s32 %s53, 1
    %s55 = scalar_select %p52, %s53, %s54
    %p58 = pneg %p52
    %p59 = scmp.eq.s32.totalorder %s17, 1
    %p60 = por %p58, %p59
    %p61 = scmp.ne.s32.totalorder %s53, %s56
    %p62 = scmp.eq.s32.totalorder %s17, 0
    %p63 = por %p61, %p62
    %p64 = scmp.ne.s32.totalorder %s53, %s56
    %p65 = scmp.eq.s32.totalorder %s22, 1
    %p66 = por %p64, %p65
    %p67 = scmp.ne.s32.totalorder %s56, %s57
    %p68 = scmp.eq.s32.totalorder %s22, 0
    %p69 = por %p67, %p68
    %p70 = scmp.ne.s32.totalorder %s56, %s57
    %p71 = scmp.eq.s32.totalorder %s23, 1
    %p72 = por %p70, %p71
    %p74 = scmp.ne.s32.totalorder %s57, %s73
    %p75 = scmp.eq.s32.totalorder %s23, 0
    %p76 = por %p74, %p75
    %s78 = sadd.s32 %s77, 1
    %p81 = scmp.eq.s32.totalorder %s17, 1
    %p82 = scmp.ne.s32.totalorder %s77, %s79
    %p83 = scmp.eq.s32.totalorder %s17, 0
    %p84 = por %p82, %p83
    %p85 = scmp.ne.s32.totalorder %s77, %s79
    %p86 = scmp.eq.s32.totalorder %s22, 1
    %p87 = por %p85, %p86
    %p88 = scmp.ne.s32.totalorder %s79, %s80
    %p89 = scmp.eq.s32.totalorder %s22, 0
    %p90 = por %p88, %p89
    %p91 = scmp.ne.s32.totalorder %s79, %s80
    %p92 = scmp.eq.s32.totalorder %s23, 1
    %p93 = por %p91, %p92
    %p95 = scmp.ne.s32.totalorder %s80, %s94
    %p96 = scmp.eq.s32.totalorder %s23, 0
    %p97 = por %p95, %p96
    %s99 = sadd.s32 %s98, 1
    %p102 = scmp.eq.s32.totalorder %s17, 1
    %p103 = scmp.ne.s32.totalorder %s98, %s100
    %p104 = scmp.eq.s32.totalorder %s17, 0
    %p105 = por %p103, %p104
    %p106 = scmp.ne.s32.totalorder %s98, %s100
    %p107 = scmp.eq.s32.totalorder %s22, 1
    %p108 = por %p106, %p107
    %p109 = scmp.ne.s32.totalorder %s100, %s101
    %p110 = scmp.eq.s32.totalorder %s22, 0
    %p111 = por %p109, %p110
    %p112 = scmp.ne.s32.totalorder %s100, %s101
    %p113 = scmp.eq.s32.totalorder %s23, 1
    %p114 = por %p112, %p113
    %p116 = scmp.ne.s32.totalorder %s101, %s115
    %p117 = scmp.eq.s32.totalorder %s23, 0
    %p118 = por %p116, %p117
    %s120 = sadd.s32 %s119, 1
    %p123 = scmp.eq.s32.totalorder %s17, 1
    %p124 = scmp.ne.s32.totalorder %s119, %s121
    %p125 = scmp.eq.s32.totalorder %s17, 0
    %p126 = por %p124, %p125
    %p127 = scmp.ne.s32.totalorder %s119, %s121
    %p128 = scmp.eq.s32.totalorder %s22, 1
    %p129 = por %p127, %p128
    %p130 = scmp.ne.s32.totalorder %s121, %s122
    %p131 = scmp.eq.s32.totalorder %s22, 0
    %p132 = por %p130, %p131
    %p133 = scmp.ne.s32.totalorder %s121, %s122
    %p134 = scmp.eq.s32.totalorder %s23, 1
    %p135 = por %p133, %p134
    %p137 = scmp.ne.s32.totalorder %s122, %s136
    %p138 = scmp.eq.s32.totalorder %s23, 0
    %p139 = por %p137, %p138
    %s141 = sadd.s32 %s140, 1
    %p144 = scmp.eq.s32.totalorder %s17, 1
    %p145 = scmp.ne.s32.totalorder %s140, %s142
    %p146 = scmp.eq.s32.totalorder %s17, 0
    %p147 = por %p145, %p146
    %p148 = scmp.ne.s32.totalorder %s140, %s142
    %p149 = scmp.eq.s32.totalorder %s22, 1
    %p150 = por %p148, %p149
    %p151 = scmp.ne.s32.totalorder %s142, %s143
    %p152 = scmp.eq.s32.totalorder %s22, 0
    %p153 = por %p151, %p152
    %p154 = scmp.ne.s32.totalorder %s142, %s143
    %p155 = scmp.eq.s32.totalorder %s23, 1
    %p156 = por %p154, %p155
    %p158 = scmp.ne.s32.totalorder %s143, %s157
    %p159 = scmp.eq.s32.totalorder %s23, 0
    %p160 = por %p158, %p159
    %s162 = sadd.s32 %s161, 1
    %p165 = scmp.eq.s32.totalorder %s17, 1
    %p166 = scmp.ne.s32.totalorder %s161, %s163
    %p167 = scmp.eq.s32.totalorder %s17, 0
    %p168 = por %p166, %p167
    %p169 = scmp.ne.s32.totalorder %s161, %s163
    %p170 = scmp.eq.s32.totalorder %s22, 1
    %p171 = por %p169, %p170
    %p172 = scmp.ne.s32.totalorder %s163, %s164
    %p173 = scmp.eq.s32.totalorder %s22, 0
    %p174 = por %p172, %p173
    %p175 = scmp.ne.s32.totalorder %s163, %s164
    %p176 = scmp.eq.s32.totalorder %s23, 1
    %p177 = por %p175, %p176
    %p179 = scmp.ne.s32.totalorder %s164, %s178
    %p180 = scmp.eq.s32.totalorder %s23, 0
    %p181 = por %p179, %p180
    %s183 = sadd.s32 %s182, 1
    %p186 = scmp.eq.s32.totalorder %s17, 1
    %p187 = scmp.ne.s32.totalorder %s182, %s184
    %p188 = scmp.eq.s32.totalorder %s17, 0
    %p189 = por %p187, %p188
    %p190 = scmp.ne.s32.totalorder %s182, %s184
    %p191 = scmp.eq.s32.totalorder %s22, 1
    %p192 = por %p190, %p191
    %p193 = scmp.ne.s32.totalorder %s184, %s185
    %p194 = scmp.eq.s32.totalorder %s22, 0
    %p195 = por %p193, %p194
    %p196 = scmp.ne.s32.totalorder %s184, %s185
    %p197 = scmp.eq.s32.totalorder %s23, 1
    %p198 = por %p196, %p197
    %p200 = scmp.ne.s32.totalorder %s185, %s199
    %p201 = scmp.eq.s32.totalorder %s23, 0
    %p202 = por %p200, %p201
    %s204 = sadd.s32 %s203, 1
    %p207 = scmp.eq.s32.totalorder %s17, 1
    %p208 = scmp.ne.s32.totalorder %s203, %s205
    %p209 = scmp.eq.s32.totalorder %s17, 0
    %p210 = por %p208, %p209
    %p211 = scmp.ne.s32.totalorder %s203, %s205
    %p212 = scmp.eq.s32.totalorder %s22, 1
    %p213 = por %p211, %p212
    %p214 = scmp.ne.s32.totalorder %s205, %s206
    %p215 = scmp.eq.s32.totalorder %s22, 0
    %p216 = por %p214, %p215
    %p217 = scmp.ne.s32.totalorder %s205, %s206
    %p218 = scmp.eq.s32.totalorder %s23, 1
    %p219 = por %p217, %p218
    %p221 = scmp.ne.s32.totalorder %s206, %s220
    %p222 = scmp.eq.s32.totalorder %s23, 0
    %p223 = por %p221, %p222
    %s224 = ssub.s32 %s17, %s24
    %p225 = scmp.eq.s32.totalorder %s224, 0
    %s227 = sadd.s32 %s226, 1
    %s228 = scalar_select %p225, %s226, %s227
    %p231 = pneg %p225
    %p232 = scmp.eq.s32.totalorder %s17, 1
    %p233 = por %p231, %p232
    %p234 = scmp.ne.s32.totalorder %s226, %s229
    %p235 = scmp.eq.s32.totalorder %s17, 0
    %p236 = por %p234, %p235
    %p237 = scmp.ne.s32.totalorder %s226, %s229
    %p238 = scmp.eq.s32.totalorder %s22, 1
    %p239 = por %p237, %p238
    %p240 = scmp.ne.s32.totalorder %s229, %s230
    %p241 = scmp.eq.s32.totalorder %s22, 0
    %p242 = por %p240, %p241
    %p243 = scmp.ne.s32.totalorder %s229, %s230
    %p244 = scmp.eq.s32.totalorder %s23, 1
    %p245 = por %p243, %p244
    %p247 = scmp.ne.s32.totalorder %s230, %s246
    %p248 = scmp.eq.s32.totalorder %s23, 0
    %p249 = por %p247, %p248
    %p250 = scmp.le.s32.totalorder 1, %s17
    %p251 = scmp.lt.s32.totalorder %s17, 3
    %p252 = pnand %p250, %p251
    %p253 = pneg %p252
    // Predicated region
    $region9: #{tpu_custom_call.1} parent=5 // pred_check
      _
    $region10: #{tpu_custom_call.1} parent=5 // pred_check_branch
      %255 = sbr.rel (%p252) target = $region12
    $region11: #{tpu_custom_call.1} parent=5 // pred_region
      %s256 = ssub.s32 %s17, 1
      // Predicated region
      $region13: #{tpu_custom_call.1} parent=11 // pred_check
        %p257 = pneg %p90
      $region14: #{tpu_custom_call.1} parent=11 // pred_check_branch
        %259 = sbr.rel (%p257) target = $region16
      $region15: #{tpu_custom_call.1} parent=11 // pred_region
        _
      $region16: #{tpu_custom_call.1} parent=11 // pred_fallthru
        _
      // Predicated region
      $region17: #{tpu_custom_call.1} parent=11 // pred_check
        %p260 = pneg %p111
      $region18: #{tpu_custom_call.1} parent=11 // pred_check_branch
        %262 = sbr.rel (%p260) target = $region20
      $region19: #{tpu_custom_call.1} parent=11 // pred_region
        _
      $region20: #{tpu_custom_call.1} parent=11 // pred_fallthru
        _
      // Predicated region
      $region21: #{tpu_custom_call.1} parent=11 // pred_check
        %p263 = pneg %p132
      $region22: #{tpu_custom_call.1} parent=11 // pred_check_branch
        %265 = sbr.rel (%p263) target = $region24
      $region23: #{tpu_custom_call.1} parent=11 // pred_region
        _
      $region24: #{tpu_custom_call.1} parent=11 // pred_fallthru
        _
      // Predicated region
      $region25: #{tpu_custom_call.1} parent=11 // pred_check
        %p266 = pneg %p153
      $region26: #{tpu_custom_call.1} parent=11 // pred_check_branch
        %268 = sbr.rel (%p266) target = $region28
      $region27: #{tpu_custom_call.1} parent=11 // pred_region
        _
      $region28: #{tpu_custom_call.1} parent=11 // pred_fallthru
        _
      // Predicated region
      $region29: #{tpu_custom_call.1} parent=11 // pred_check
        %p269 = pneg %p174
      $region30: #{tpu_custom_call.1} parent=11 // pred_check_branch
        %271 = sbr.rel (%p269) target = $region32
      $region31: #{tpu_custom_call.1} parent=11 // pred_region
        _
      $region32: #{tpu_custom_call.1} parent=11 // pred_fallthru
        _
      // Predicated region
      $region33: #{tpu_custom_call.1} parent=11 // pred_check
        %p272 = pneg %p195
      $region34: #{tpu_custom_call.1} parent=11 // pred_check_branch
        %274 = sbr.rel (%p272) target = $region36
      $region35: #{tpu_custom_call.1} parent=11 // pred_region
        _
      $region36: #{tpu_custom_call.1} parent=11 // pred_fallthru
        _
      // Predicated region
      $region37: #{tpu_custom_call.1} parent=11 // pred_check
        %p275 = pneg %p216
      $region38: #{tpu_custom_call.1} parent=11 // pred_check_branch
        %277 = sbr.rel (%p275) target = $region40
      $region39: #{tpu_custom_call.1} parent=11 // pred_region
        _
      $region40: #{tpu_custom_call.1} parent=11 // pred_fallthru
        _
    $region12: #{tpu_custom_call.1} parent=5 // pred_fallthru
      _
    %p278 = scmp.lt.s32.totalorder %s17, 2
    // Predicated region
    $region41: #{tpu_custom_call.1} parent=5 // pred_check
      %p279 = pneg %p278
    $region42: #{tpu_custom_call.1} parent=5 // pred_check_branch
      %281 = sbr.rel (%p279) target = $region44
    $region43: #{tpu_custom_call.1} parent=5 // pred_region
      // Predicated region
      $region45: #{tpu_custom_call.1} parent=43 // pred_check
        %p282 = pneg %p37
      $region46: #{tpu_custom_call.1} parent=43 // pred_check_branch
        %284 = sbr.rel (%p282) target = $region48
      $region47: #{tpu_custom_call.1} parent=43 // pred_region
        %s285 = smul.u32 2, %s17
        %p286 = scmp.lt.s32.totalorder %s285, 3
        %s287 = scalar_select %p286, %s285, 3
        %s288 = smul.addr %s287, 4
        %s289 = scalar_lea.vmem %s0, %s288
        %s290 = smul.u32 2, %s17
      $region48: #{tpu_custom_call.1} parent=43 // pred_fallthru
        _
      // Predicated region
      $region49: #{tpu_custom_call.1} parent=43 // pred_check
        %p291 = pneg %p63
      $region50: #{tpu_custom_call.1} parent=43 // pred_check_branch
        %293 = sbr.rel (%p291) target = $region52
      $region51: #{tpu_custom_call.1} parent=43 // pred_region
        %s294 = smul.u32 2, %s17
        %p295 = scmp.lt.s32.totalorder %s294, 3
        %s296 = scalar_select %p295, %s294, 3
        %s297 = smul.addr %s296, 4
        %s298 = scalar_lea.vmem %s1, %s297
        %s299 = smul.u32 2, %s17
      $region52: #{tpu_custom_call.1} parent=43 // pred_fallthru
        _
    $region44: #{tpu_custom_call.1} parent=5 // pred_fallthru
      _
    %p300 = scmp.le.s32.totalorder 1, %s17
    %p301 = scmp.lt.s32.totalorder %s17, 3
    %p302 = pnand %p300, %p301
    %p303 = pneg %p302
    // Predicated region
    $region53: #{tpu_custom_call.1} parent=5 // pred_check
      _
    $region54: #{tpu_custom_call.1} parent=5 // pred_check_branch
      %305 = sbr.rel (%p302) target = $region56
    $region55: #{tpu_custom_call.1} parent=5 // pred_region
      %s306 = ssub.s32 %s17, 1
      %s307 = smul.u32 2, %s22
      %p308 = scmp.lt.s32.totalorder %s307, 3
      %s309 = scalar_select %p308, %s307, 3
      %s310 = smul.addr %s309, 4
      %s311 = scalar_lea.vmem %s0, %s310
      %p312 = pneg %p43
      %p313 = pneg %p40
      %s314 = smul.u32 2, %s22
      %p315 = scmp.lt.s32.totalorder %s314, 3
      %s316 = scalar_select %p315, %s314, 3
      %s317 = smul.addr %s316, 4
      %s318 = scalar_lea.vmem %s1, %s317
      %p319 = pneg %p69
      %p320 = pneg %p66
      %p321 = pneg %p90
      %p322 = pneg %p87
      %p323 = pneg %p111
      %p324 = pneg %p108
      %p325 = pneg %p132
      %p326 = pneg %p129
      %p327 = pneg %p153
      %p328 = pneg %p150
      %p329 = pneg %p174
      %p330 = pneg %p171
      %p331 = pneg %p195
      %p332 = pneg %p192
      %p333 = pneg %p216
      %p334 = pneg %p213
      %p335 = pneg %p242
      %p336 = pneg %p239
      %s337 = smul.u32 2, %s22
      %p338 = scmp.lt.s32.totalorder %s337, 3
      %s339 = scalar_select %p338, %s337, 3
      %s340 = smul.addr %s339, 8
      %s341 = scalar_lea.vmem %s9, %s340
      %s342 = smul.u32 2, %s22
      %p343 = scmp.lt.s32.totalorder %s342, 3
      %s344 = scalar_select %p343, %s342, 3
      %s345 = smul.addr %s344, 4
      %s346 = scalar_lea.vmem %s0, %s345
      %s347 = smul.u32 2, %s22
      %s348 = smul.u32 2, %s22
      %p349 = scmp.lt.s32.totalorder %s348, 3
      %s350 = scalar_select %p349, %s348, 3
      %s351 = smul.addr %s350, 4
      %s352 = scalar_lea.vmem %s1, %s351
      %s353 = smul.u32 2, %s22
      %s354 = smul.u32 2, %s22
      %p355 = scmp.lt.s32.totalorder %s354, 3
      %s356 = scalar_select %p355, %s354, 3
      %s357 = smul.addr %s356, 8
      %s358 = scalar_lea.vmem %s9, %s357
      %s359 = smul.u32 2, %s22
      %v361 = vld [vmem:[%s346] sm:$0xf]
      %v362 = vld [vmem:[%s346 + $0x4] sm:$0xf]
      %v363 = vld [vmem:[%s2] sm:$0xf]
      %v364 = vld [vmem:[%s2 + $0x4] sm:$0xf]
      %v365 = vld [vmem:[%s352] sm:$0xf]
      %v366 = vld [vmem:[%s352 + $0x4] sm:$0xf]
      %v367 = vld [vmem:[%s3] sm:$0xf]
      %v368 = vld [vmem:[%s3 + $0x4] sm:$0xf]
      %v371 = vunpack.c.l.b16 %v365
      %v372 = vunpack.c.l.b16 %v366
      %v373 = vpack.c.b16 %v372, %v371
      %v376 = vunpack.c.l.b16 %v367
      %v377 = vunpack.c.l.b16 %v368
      %v378 = vpack.c.b16 %v377, %v376
      %vm380 = vcmask 130048
      %v382 = vsel %vm380, %v373, 0
      %384 = vmatprep.subr.bf16.mxu0 0
      %385 = vmatpush1.bf16.msra.mxu0 %v378
      %386 = vmatprep.subr.bf16.mxu0 0
      %387 = vmatpush1.bf16.msra.mxu0 0
      %388 = vmatprep.subr.bf16.mxu0 0
      %389 = vmatpush1.bf16.msra.mxu0 0
      %390 = vmatprep.subr.bf16.mxu0 0
      %391 = vmatpush1.bf16.msra.mxu0 0
      %392 = vmatprep.subr.bf16.mxu0 0
      %393 = vmatpush1.bf16.msra.mxu0 0
      %394 = vmatprep.subr.bf16.mxu0 0
      %395 = vmatpush1.bf16.msra.mxu0 0
      %396 = vmatprep.subr.bf16.mxu0 0
      %397 = vmatpush1.bf16.msra.mxu0 0
      %398 = vmatprep.subr.bf16.mxu0 0
      %399 = vmatpush1.bf16.msra.mxu0 0
      %400 = vmatprep.subr.bf16.mxu0 0
      %401 = vmatpush1.bf16.msra.mxu0 0
      %402 = vmatprep.subr.bf16.mxu0 0
      %403 = vmatpush1.bf16.msra.mxu0 0
      %404 = vmatprep.subr.bf16.mxu0 0
      %405 = vmatpush1.bf16.msra.mxu0 0
      %406 = vmatprep.subr.bf16.mxu0 0
      %407 = vmatpush1.bf16.msra.mxu0 0
      %408 = vmatprep.subr.bf16.mxu0 0
      %409 = vmatpush1.bf16.msra.mxu0 0
      %410 = vmatprep.subr.bf16.mxu0 0
      %411 = vmatpush1.bf16.msra.mxu0 0
      %412 = vmatprep.subr.bf16.mxu0 0
      %413 = vmatpush1.bf16.msra.mxu0 0
      %414 = vmatprep.subr.bf16.mxu0 0
      %415 = vmatpush1.bf16.msra.mxu0 0
      %416 = vmatprep.mubr.bf16.mxu0 0
      %417 = vmatmul.mubr.bf16.gmra.mrb[0].mxu0 %v382
      %v418 = vpop.f32.mrb[0].mxu0
      %v419 = vadd.f32 0.0, %v418
      %v420 = vpop.f32.mrb[0].mxu0
      %v421 = vpop.f32.mrb[0].mxu0
      %v422 = vadd.f32 0.0, %v421
      %v423 = vpop.f32.mrb[0].mxu0
      %424 = vdwg.mxu0
      %v427 = vunpack.c.l.b16 %v361
      %v428 = vunpack.c.l.b16 %v362
      %v429 = vpack.c.b16 %v428, %v427
      %v432 = vunpack.c.l.b16 %v363
      %v433 = vunpack.c.l.b16 %v364
      %v434 = vpack.c.b16 %v433, %v432
      %v437 = vsel %vm380, %v429, 0
      %439 = vmatprep.subr.bf16.mxu0 0
      %440 = vmatpush1.bf16.msra.mxu0 %v434
      %441 = vmatprep.subr.bf16.mxu0 0
      %442 = vmatpush1.bf16.msra.mxu0 0
      %443 = vmatprep.subr.bf16.mxu0 0
      %444 = vmatpush1.bf16.msra.mxu0 0
      %445 = vmatprep.subr.bf16.mxu0 0
      %446 = vmatpush1.bf16.msra.mxu0 0
      %447 = vmatprep.subr.bf16.mxu0 0
      %448 = vmatpush1.bf16.msra.mxu0 0
      %449 = vmatprep.subr.bf16.mxu0 0
      %450 = vmatpush1.bf16.msra.mxu0 0
      %451 = vmatprep.subr.bf16.mxu0 0
      %452 = vmatpush1.bf16.msra.mxu0 0
      %453 = vmatprep.subr.bf16.mxu0 0
      %454 = vmatpush1.bf16.msra.mxu0 0
      %455 = vmatprep.subr.bf16.mxu0 0
      %456 = vmatpush1.bf16.msra.mxu0 0
      %457 = vmatprep.subr.bf16.mxu0 0
      %458 = vmatpush1.bf16.msra.mxu0 0
      %459 = vmatprep.subr.bf16.mxu0 0
      %460 = vmatpush1.bf16.msra.mxu0 0
      %461 = vmatprep.subr.bf16.mxu0 0
      %462 = vmatpush1.bf16.msra.mxu0 0
      %463 = vmatprep.subr.bf16.mxu0 0
      %464 = vmatpush1.bf16.msra.mxu0 0
      %465 = vmatprep.subr.bf16.mxu0 0
      %466 = vmatpush1.bf16.msra.mxu0 0
      %467 = vmatprep.subr.bf16.mxu0 0
      %468 = vmatpush1.bf16.msra.mxu0 0
      %469 = vmatprep.subr.bf16.mxu0 0
      %470 = vmatpush1.bf16.msra.mxu0 0
      %471 = vmatprep.mubr.bf16.mxu0 0
      %472 = vmatmul.mubr.bf16.gmra.mrb[0].mxu0 %v437
      %v473 = vpop.f32.mrb[0].mxu0
      %v474 = vadd.f32 %v419, %v473
      %v475 = vpop.f32.mrb[0].mxu0
      %v476 = vpop.f32.mrb[0].mxu0
      %v477 = vadd.f32 %v422, %v476
      %v478 = vpop.f32.mrb[0].mxu0
      %479 = vdwg.mxu0
      %v480 = vld [vmem:[%s4] sm:$0x1]
      %v482 = vlaneseq
      %v483 = vshrl.u32 %v482, 7
      %v484 = vsub.s32 0, %v483
      %v485 = vrot.slane %v480, %v484
      %v487 = vadd.f32 %v474, %v485
      %v488 = vadd.f32 %v477, %v485
      %v489 = vmax.f32 %v487, 0.0
      %v490 = vmax.f32 %v488, 0.0
      %v491 = vpack.c.bf16 %v490, %v489
      %v492 = vld [vmem:[%s5] sm:$0xf]
      %v493 = vld [vmem:[%s5 + $0x4] sm:$0xf]
      %v494 = vld [vmem:[%s5 + $0x8] sm:$0xf]
      %v495 = vld [vmem:[%s5 + $0xc] sm:$0xf]
      %v496 = vld [vmem:[%s5 + $0x10] sm:$0xf]
      %v497 = vld [vmem:[%s5 + $0x14] sm:$0xf]
      %v498 = vld [vmem:[%s5 + $0x18] sm:$0xf]
      %v499 = vld [vmem:[%s5 + $0x1c] sm:$0xf]
      %v500 = vld [vmem:[%s5 + $0x20] sm:$0xf]
      %v501 = vld [vmem:[%s5 + $0x24] sm:$0xf]
      %v502 = vld [vmem:[%s5 + $0x28] sm:$0xf]
      %v503 = vld [vmem:[%s5 + $0x2c] sm:$0xf]
      %v504 = vld [vmem:[%s5 + $0x30] sm:$0xf]
      %v505 = vld [vmem:[%s5 + $0x34] sm:$0xf]
      %v506 = vld [vmem:[%s5 + $0x38] sm:$0xf]
      %v507 = vld [vmem:[%s5 + $0x3c] sm:$0xf]
      %v508 = vld [vmem:[%s6] sm:$0x1]
      %v510 = vlaneseq
      %v511 = vshrl.u32 %v510, 7
      %v512 = vsub.s32 0, %v511
      %v513 = vrot.slane %v508, %v512
      %v531 = vunpack.c.l.b16 %v492
      %v532 = vunpack.c.l.b16 %v493
      %v533 = vunpack.c.l.b16 %v494
      %v534 = vunpack.c.l.b16 %v495
      %v535 = vunpack.c.l.b16 %v496
      %v536 = vunpack.c.l.b16 %v497
      %v537 = vunpack.c.l.b16 %v498
      %v538 = vunpack.c.l.b16 %v499
      %v539 = vunpack.c.l.b16 %v500
      %v540 = vunpack.c.l.b16 %v501
      %v541 = vunpack.c.l.b16 %v502
      %v542 = vunpack.c.l.b16 %v503
      %v543 = vunpack.c.l.b16 %v504
      %v544 = vunpack.c.l.b16 %v505
      %v545 = vunpack.c.l.b16 %v506
      %v546 = vunpack.c.l.b16 %v507
      %v547 = vpack.c.b16 %v532, %v531
      %v548 = vpack.c.b16 %v534, %v533
      %v549 = vpack.c.b16 %v536, %v535
      %v550 = vpack.c.b16 %v538, %v537
      %v551 = vpack.c.b16 %v540, %v539
      %v552 = vpack.c.b16 %v542, %v541
      %v553 = vpack.c.b16 %v544, %v543
      %v554 = vpack.c.b16 %v546, %v545
      %563 = vmatprep.subr.bf16.mxu0 0
      %564 = vmatpush1.bf16.msra.mxu0 %v547
      %565 = vmatprep.subr.bf16.mxu0 0
      %566 = vmatpush1.bf16.msra.mxu0 %v548
      %567 = vmatprep.subr.bf16.mxu0 0
      %568 = vmatpush1.bf16.msra.mxu0 %v549
      %569 = vmatprep.subr.bf16.mxu0 0
      %570 = vmatpush1.bf16.msra.mxu0 %v550
      %571 = vmatprep.subr.bf16.mxu0 0
      %572 = vmatpush1.bf16.msra.mxu0 %v551
      %573 = vmatprep.subr.bf16.mxu0 0
      %574 = vmatpush1.bf16.msra.mxu0 %v552
      %575 = vmatprep.subr.bf16.mxu0 0
      %576 = vmatpush1.bf16.msra.mxu0 %v553
      %577 = vmatprep.subr.bf16.mxu0 0
      %578 = vmatpush1.bf16.msra.mxu0 %v554
      %579 = vmatprep.subr.bf16.mxu0 0
      %580 = vmatpush1.bf16.msra.mxu0 0
      %581 = vmatprep.subr.bf16.mxu0 0
      %582 = vmatpush1.bf16.msra.mxu0 0
      %583 = vmatprep.subr.bf16.mxu0 0
      %584 = vmatpush1.bf16.msra.mxu0 0
      %585 = vmatprep.subr.bf16.mxu0 0
      %586 = vmatpush1.bf16.msra.mxu0 0
      %587 = vmatprep.subr.bf16.mxu0 0
      %588 = vmatpush1.bf16.msra.mxu0 0
      %589 = vmatprep.subr.bf16.mxu0 0
      %590 = vmatpush1.bf16.msra.mxu0 0
      %591 = vmatprep.subr.bf16.mxu0 0
      %592 = vmatpush1.bf16.msra.mxu0 0
      %593 = vmatprep.subr.bf16.mxu0 0
      %594 = vmatpush1.bf16.msra.mxu0 0
      %595 = vmatprep.mubr.bf16.mxu0 0
      %596 = vmatmul.mubr.bf16.gmra.mrb[0].mxu0 %v491
      %v597 = vpop.f32.mrb[0].mxu0
      %v598 = vadd.f32 %v513, %v597
      %v599 = vpop.f32.mrb[0].mxu0
      %v600 = vpop.f32.mrb[0].mxu0
      %v601 = vadd.f32 %v513, %v600
      %v602 = vpop.f32.mrb[0].mxu0
      %603 = vdwg.mxu0
      %v604 = vmax.f32 %v598, 0.0
      %v605 = vmax.f32 %v601, 0.0
      %v606 = vld [vmem:[%s7] sm:$0x1]
      %v608 = vlaneseq
      %v609 = vshrl.u32 %v608, 7
      %v610 = vsub.s32 0, %v609
      %v611 = vrot.slane %v606, %v610
      %v613 = vmul.f32 %v604, %v611
      %v614 = vmul.f32 %v605, %v611
      %vm615 = vcmask 523264
      %v616 = vsel %vm615, %v613, 0.0
      %617 = vadd.xlane.f32.xlu0 %v616
      %v618 = vpop.xlane.xlu0 %617
      %v619 = vsel %vm615, %v614, 0.0
      %620 = vadd.xlane.f32.xlu0 %v619
      %v621 = vpop.xlane.xlu0 %620
      %v622 = vld [vmem:[#allocation2] sm:$0x1]
      %v624 = vlaneseq
      %v625 = vshrl.u32 %v624, 7
      %v626 = vsub.s32 0, %v625
      %v627 = vrot.slane %v622, %v626
      %v629 = vadd.f32 %v618, %v627
      %v630 = vadd.f32 %v621, %v627
      %v631 = vxor.u32 %v629, 2147483648
      %v632 = vxor.u32 %v630, 2147483648
      %v633 = vmul.f32 %v631, 1.442695
      %v634 = vpow.pop %v633
      %v635 = vmul.f32 %v632, 1.442695
      %v636 = vpow.pop %v635
      %v637 = vadd.f32 %v634, 1.0
      %v638 = vadd.f32 %v636, 1.0
      %v639 = vrcp.pop %v637
      %v640 = vmul.f32 1.0, %v639
      %v641 = vrcp.pop %v638
      %v642 = vmul.f32 1.0, %v641
      %vm643 = vcmask 7168
      %644 = vst.msk [vmem:[%s358] sm:$0xff] %vm643, %v640
      %645 = vst.msk [vmem:[%s358 + $0x8] sm:$0xff] %vm643, %v642
      %s646 = smul.u32 2, %s22
      %p647 = scmp.lt.s32.totalorder %s646, 3
      %s648 = scalar_select %p647, %s646, 3
      %s649 = smul.addr %s648, 8
      %s650 = scalar_lea.vmem %s9, %s649
      // Predicated region
      $region57: #{tpu_custom_call.1} parent=55 // pred_check
        %p651 = pneg %p239
      $region58: #{tpu_custom_call.1} parent=55 // pred_check_branch
        %653 = sbr.rel (%p651) target = $region60
      $region59: #{tpu_custom_call.1} parent=55 // pred_region
        %s654 = smul.u32 2, %s22
      $region60: #{tpu_custom_call.1} parent=55 // pred_fallthru
        _
    $region56: #{tpu_custom_call.1} parent=5 // pred_fallthru
      _
    %p655 = scmp.le.s32.totalorder 2, %s17
    // Predicated region
    $region61: #{tpu_custom_call.1} parent=5 // pred_check
      %p656 = pneg %p655
    $region62: #{tpu_custom_call.1} parent=5 // pred_check_branch
      %658 = sbr.rel (%p656) target = $region64
    $region63: #{tpu_custom_call.1} parent=5 // pred_region
      %s659 = ssub.s32 %s17, 2
      // Predicated region
      $region65: #{tpu_custom_call.1} parent=63 // pred_check
        %p660 = pneg %p245
      $region66: #{tpu_custom_call.1} parent=63 // pred_check_branch
        %662 = sbr.rel (%p660) target = $region68
      $region67: #{tpu_custom_call.1} parent=63 // pred_region
        %s663 = smul.u32 2, %s23
        %p664 = scmp.lt.s32.totalorder %s663, 3
        %s665 = scalar_select %p664, %s663, 3
        %s666 = smul.addr %s665, 8
        %s667 = scalar_lea.vmem %s9, %s666
      $region68: #{tpu_custom_call.1} parent=63 // pred_fallthru
        _
    $region64: #{tpu_custom_call.1} parent=5 // pred_fallthru
      _
  $region6: #{tpu_custom_call.1} parent=0 // loop_footer
    %s21 = sadd.s32 1, %s17
  $region7: #{tpu_custom_call.1} parent=0 // loop_footer_branch
    %16 = sbr.rel target = $region3
  $region8: #{tpu_custom_call.1} parent=0 // loop_exit
    _

</llo_original>
